<compile_context>
chip_gen: v5e
topology: v5e:2x2
jax: 0.10.0
libtpu: 0.0.40
codegen_flags: <defaults>
</compile_context>

<pallas_src>
import jax
import jax.numpy as jnp
from jax.experimental import pallas as pl
from jax.experimental.pallas import tpu as pltpu

EPS = 1e-6  # matches torch.nn.functional.pairwise_distance default eps


def _num_tensorcores():
    """2 on megacore chips (v4/v5p/v7x), 1 on single-TC chips (v5e/v6e)."""
    try:
        kind = jax.devices()[0].device_kind.lower()
    except Exception:
        return 1
    if any(s in kind for s in ("lite", "v5e", "v6e")):
        return 1
    return 2


def _pick_block_rows(batch, feat, itemsize, per_block_bytes=3 * 1024 * 1024):
    """Rows per tile, sized from the lane-padded footprint of a row.

    ~3 MiB per input block => 2 inputs x 2 pipeline buffers ~= 12 MiB, which
    amortizes the ~0.35us/step pipeline overhead to a few % of the DMA time on
    v5e/v6e/v7x while leaving headroom under the 48 MiB VMEM limit.
    """
    sub = 16 if itemsize < 4 else 8                       # sublane packing (bf16 -> 16)
    padded_batch = -(-batch // sub) * sub
    row_bytes = (-(-feat // 128) * 128) * itemsize        # lane-padded row footprint
    budget_rows = max(256, (per_block_bytes // row_bytes) // 256 * 256)
    budget_rows = min(budget_rows, 8192)                  # skinny (TB,1) temps / iota grow ~TB
    return int(min(budget_rows, padded_batch))


def contrastive_loss(x1, x2, y, margin=1.0, *, block_rows=None, num_cores=None,
                     vmem_limit_bytes=48 * 1024 * 1024):
    """Mean contrastive loss, streamed over the batch with a Pallas TPU kernel."""
    B, D = x1.shape
    assert x2.shape == (B, D)
    y = jnp.reshape(y, (-1,))
    assert y.shape[0] == B
    itemsize = jnp.dtype(x1.dtype).itemsize
    margin_f = float(margin)

    if block_rows is None:
        TB = _pick_block_rows(B, D, itemsize)
    else:
        TB = max(8, -(-int(block_rows) // 8) * 8)
    NRB = -(-B // TB)                                     # number of row blocks

    NC = num_cores if num_cores is not None else _num_tensorcores()
    NC = max(1, min(int(NC), NRB))                        # parallel (megacore) chunks
    TPC = -(-NRB // NC)                                   # reduction steps per chunk
    total_steps = NC * TPC
    # Padding rows exist when the streamed blocks over-cover the true batch
    # (ragged last tile and/or clamped duplicate steps).
    needs_mask = (total_steps * TB) != B
    two_d = NC > 1

    # Lane-dense y slab: (NRB, TB) instead of a (B, 1) column, which would be
    # lane-padded to 128 in TPU layout (512 B of HBM traffic per row).
    y_slab = jnp.pad(y.astype(jnp.float32), (0, NRB * TB - B)).reshape(NRB, TB)

    def kernel(x1_ref, x2_ref, y_ref, out_ref):
        if two_d:
            step = pl.program_id(1)
            logical_block = pl.program_id(0) * TPC + step
        else:
            step = pl.program_id(0)
            logical_block = step

        @pl.when(step == 0)
        def _():
            out_ref[...] = jnp.zeros_like(out_ref)

        x1t = x1_ref[...].astype(jnp.float32)             # (TB, D)
        x2t = x2_ref[...].astype(jnp.float32)             # (TB, D)
        yt = y_ref[...]                                   # (1, TB) lane-dense f32

        # F.pairwise_distance: ||x1 - x2 + eps||_2 along the feature dim.
        diff = x1t - x2t + EPS
        d2 = jnp.sum(diff * diff, axis=-1, keepdims=True)             # (TB, 1)
        dist = jnp.sqrt(d2)                                           # margin path only
        neg = jnp.square(jnp.maximum(margin_f - dist, 0.0))           # (TB, 1)

        if needs_mask:
            # Select (not multiply): garbage/NaN in out-of-range rows must be
            # discarded, not scaled.  Free filler under the DMA bound.
            row_ids = logical_block * TB + jax.lax.broadcasted_iota(
                jnp.int32, (TB, 1), 0)
            valid = row_ids < B
            d2 = jnp.where(valid, d2, 0.0)
            neg = jnp.where(valid, neg, 0.0)

        # Per-block sums via skinny MXU contractions against the lane-dense
        # y row; the positive term uses d^2 directly.
        pos_sum = jnp.dot(yt, d2, preferred_element_type=jnp.float32)          # (1, 1)
        neg_sum = jnp.dot(1.0 - yt, neg, preferred_element_type=jnp.float32)   # (1, 1)
        out_ref[...] += pos_sum + neg_sum                 # resident accumulator block

    if two_d:
        def row_block(c, j):
            # Clamp so over-provisioned (c, j) never addresses past the last
            # block; duplicate reads are fully masked out in the kernel.
            return (jnp.minimum(c * TPC + j, NRB - 1), 0)
        x_spec = pl.BlockSpec((TB, D), row_block)
        y_spec = pl.BlockSpec((1, TB), row_block)
        out_spec = pl.BlockSpec((1, 1), lambda c, j: (c, 0))
        grid = (NC, TPC)
        # On v7x the leading "parallel" axis shards across the two TensorCores.
        # (pltpu.CORE_PARALLEL / pl.core_map is the escape hatch if a toolchain
        # does not split plain "parallel" across cores.)
        dims = ("parallel", "arbitrary")
    else:
        x_spec = pl.BlockSpec((TB, D), lambda j: (j, 0))
        y_spec = pl.BlockSpec((1, TB), lambda j: (j, 0))
        out_spec = pl.BlockSpec((1, 1), lambda j: (0, 0))
        grid = (NRB,)
        dims = ("arbitrary",)

    row_bytes_padded = (-(-D // 128) * 128) * itemsize
    partials = pl.pallas_call(
        kernel,
        out_shape=jax.ShapeDtypeStruct((NC, 1), jnp.float32),
        grid=grid,
        in_specs=[x_spec, x_spec, y_spec],
        out_specs=out_spec,
        compiler_params=pltpu.CompilerParams(
            dimension_semantics=dims,
            vmem_limit_bytes=int(vmem_limit_bytes),
        ),
        cost_estimate=pl.CostEstimate(
            flops=6 * B * D + 12 * B,
            transcendentals=B,
            bytes_accessed=2 * B * row_bytes_padded + NRB * TB * 4 + NC * 4,
        ),
    )(x1, x2, y_slab)

    # Final mean uses the true batch size (padding rows contribute 0).
    return jnp.sum(partials) / B


def _reference(x1, x2, y, margin=1.0):
    """Plain-JAX mirror of the PyTorch forward."""
    diff = x1.astype(jnp.float32) - x2.astype(jnp.float32) + EPS
    dist = jnp.sqrt(jnp.sum(diff * diff, axis=-1))
    return jnp.mean(y * dist ** 2 + (1.0 - y) * jnp.maximum(margin - dist, 0.0) ** 2)


if __name__ == "__main__":
    key = jax.random.PRNGKey(0)
    k1, k2, k3 = jax.random.split(key, 3)

    B, D = 20, 32
    x1 = jax.random.normal(k1, (B, D), dtype=jnp.float32)
    x2 = jax.random.normal(k2, (B, D), dtype=jnp.float32)
    y = jax.random.bernoulli(k3, 0.5, (B,)).astype(jnp.float32)
    ref = _reference(x1, x2, y, margin=1.0)

    # 1) Default config: auto tile (single padded block here), auto core count.
    loss = contrastive_loss(x1, x2, y, margin=1.0)
    jax.block_until_ready(loss)
    assert jnp.allclose(loss, ref, rtol=1e-5, atol=1e-5), (loss, ref)

    # 2) Forced multi-block, 2-chunk megacore path: ragged last tile, clamped
    #    duplicate step, streaming accumulation into the resident out block.
    loss2 = contrastive_loss(x1, x2, y, margin=1.0, block_rows=8, num_cores=2)
    jax.block_until_ready(loss2)
    assert jnp.allclose(loss2, ref, rtol=1e-5, atol=1e-5), (loss2, ref)

    # 3) bf16 inputs (kernel upcasts to f32); halves HBM traffic.
    loss3 = contrastive_loss(x1.astype(jnp.bfloat16), x2.astype(jnp.bfloat16),
                             y, margin=1.0)
    jax.block_until_ready(loss3)
    assert jnp.allclose(loss3, ref, rtol=3e-2, atol=3e-2), (loss3, ref)

    print("KERNEL_OK")
</pallas_src>

<mosaic_0001>
module attributes {stable_mosaic.version = 11 : i64} {
  func.func @kernel(%arg0: i32, %arg1: memref<24x32xf32, #tpu.memory_space<vmem>>, %arg2: memref<24x32xf32, #tpu.memory_space<vmem>>, %arg3: memref<1x24xf32, #tpu.memory_space<vmem>>, %arg4: memref<1x1xf32, #tpu.memory_space<vmem>>) attributes {dimension_semantics = [#tpu.dimension_semantics<arbitrary>], iteration_bounds = array<i64: 1>, scalar_prefetch = 0 : i64, scratch_operands = 0 : i64, tpu.core_type = #tpu.core_type<tc>, window_params = [{transform_indices = @transform_0, window_bounds = array<i64: 24, 32>}, {transform_indices = @transform_1, window_bounds = array<i64: 24, 32>}, {transform_indices = @transform_2, window_bounds = array<i64: 1, 24>}, {pipeline_mode = #tpu.pipeline_mode<synchronous>, transform_indices = @transform_3, window_bounds = array<i64: 1, 1>}]} {
    %c0_i32 = arith.constant 0 : i32
    %0 = arith.cmpi eq, %arg0, %c0_i32 : i32
    %1 = arith.extui %0 : i1 to i32
    %c0_i32_0 = arith.constant 0 : i32
    %2 = arith.cmpi ne, %1, %c0_i32_0 : i32
    scf.if %2 {
      %cst_18 = arith.constant 0.000000e+00 : f32
      %36 = vector.broadcast %cst_18 : f32 to vector<1x1xf32>
      %c0_19 = arith.constant 0 : index
      %c0_20 = arith.constant 0 : index
      %37 = vector.load %arg4[%c0_19, %c0_20] : memref<1x1xf32, #tpu.memory_space<vmem>>, vector<1x1xf32>
      tpu.vector_store %arg4[%c0_19, %c0_20], %36 {strides = array<i32>} : memref<1x1xf32, #tpu.memory_space<vmem>>, vector<1x1xf32>,
    } else {
    }
    %c0 = arith.constant 0 : index
    %c0_1 = arith.constant 0 : index
    %3 = vector.load %arg1[%c0, %c0_1] : memref<24x32xf32, #tpu.memory_space<vmem>>, vector<24x32xf32>
    %c0_2 = arith.constant 0 : index
    %c0_3 = arith.constant 0 : index
    %4 = vector.load %arg2[%c0_2, %c0_3] : memref<24x32xf32, #tpu.memory_space<vmem>>, vector<24x32xf32>
    %c0_4 = arith.constant 0 : index
    %c0_5 = arith.constant 0 : index
    %5 = vector.load %arg3[%c0_4, %c0_5] : memref<1x24xf32, #tpu.memory_space<vmem>>, vector<1x24xf32>
    %6 = arith.subf %3, %4 : vector<24x32xf32>
    %cst = arith.constant 9.99999997E-7 : f32
    %7 = vector.broadcast %cst : f32 to vector<24x32xf32>
    %8 = arith.addf %6, %7 : vector<24x32xf32>
    %9 = arith.mulf %8, %8 : vector<24x32xf32>
    %cst_6 = arith.constant dense<0.000000e+00> : vector<24xf32>
    %10 = vector.multi_reduction <add>, %9, %cst_6 [1] : vector<24x32xf32> to vector<24xf32>
    %11 = vector.shape_cast %10 : vector<24xf32> to vector<24x1xf32>
    %12 = math.sqrt %11 : vector<24x1xf32>
    %cst_7 = arith.constant 1.000000e+00 : f32
    %13 = vector.broadcast %cst_7 : f32 to vector<24x1xf32>
    %14 = arith.subf %13, %12 : vector<24x1xf32>
    %cst_8 = arith.constant 0.000000e+00 : f32
    %15 = vector.broadcast %cst_8 : f32 to vector<24x1xf32>
    %16 = arith.maximumf %14, %15 : vector<24x1xf32>
    %17 = arith.mulf %16, %16 : vector<24x1xf32>
    %c24_i32 = arith.constant 24 : i32
    %18 = arith.muli %arg0, %c24_i32 : i32
    %19 = tpu.iota {dimensions = array<i32: 0>} : vector<24x1xi32>
    %20 = vector.broadcast %18 : i32 to vector<24x1xi32>
    %21 = arith.addi %20, %19 : vector<24x1xi32>
    %c20_i32 = arith.constant 20 : i32
    %22 = vector.broadcast %c20_i32 : i32 to vector<24x1xi32>
    %23 = arith.cmpi slt, %21, %22 : vector<24x1xi32>
    %cst_9 = arith.constant 0.000000e+00 : f32
    %24 = vector.broadcast %cst_9 : f32 to vector<24x1xf32>
    %25 = arith.select %23, %11, %24 : vector<24x1xi1>, vector<24x1xf32>
    %cst_10 = arith.constant 0.000000e+00 : f32
    %26 = vector.broadcast %cst_10 : f32 to vector<24x1xf32>
    %27 = arith.select %23, %17, %26 : vector<24x1xi1>, vector<24x1xf32>
    %cst_11 = arith.constant dense<0.000000e+00> : vector<1x1xf32>
    %28 = tpu.matmul %5, %25, %cst_11 {dimension_numbers = #tpu.dot_dimension_numbers<[1], [0], [0], [1], [0, 0, 1, 1], [], []>} : vector<1x24xf32>, vector<24x1xf32>, vector<1x1xf32> -> vector<1x1xf32>
    %cst_12 = arith.constant 1.000000e+00 : f32
    %29 = vector.broadcast %cst_12 : f32 to vector<1x24xf32>
    %30 = arith.subf %29, %5 : vector<1x24xf32>
    %cst_13 = arith.constant dense<0.000000e+00> : vector<1x1xf32>
    %31 = tpu.matmul %30, %27, %cst_13 {dimension_numbers = #tpu.dot_dimension_numbers<[1], [0], [0], [1], [0, 0, 1, 1], [], []>} : vector<1x24xf32>, vector<24x1xf32>, vector<1x1xf32> -> vector<1x1xf32>
    %c0_14 = arith.constant 0 : index
    %c0_15 = arith.constant 0 : index
    %32 = vector.load %arg4[%c0_14, %c0_15] : memref<1x1xf32, #tpu.memory_space<vmem>>, vector<1x1xf32>
    %33 = arith.addf %28, %31 : vector<1x1xf32>
    %34 = arith.addf %32, %33 : vector<1x1xf32>
    %c0_16 = arith.constant 0 : index
    %c0_17 = arith.constant 0 : index
    %35 = vector.load %arg4[%c0_16, %c0_17] : memref<1x1xf32, #tpu.memory_space<vmem>>, vector<1x1xf32>
    tpu.vector_store %arg4[%c0_16, %c0_17], %34 {strides = array<i32>} : memref<1x1xf32, #tpu.memory_space<vmem>>, vector<1x1xf32>,
    return
  }
  func.func @transform_0(%arg0: i32) -> (i32, i32) {
    %c0_i32 = arith.constant 0 : i32
    %c0_i32_0 = arith.constant 0 : i32
    return %arg0, %c0_i32 : i32, i32
  }
  func.func @transform_1(%arg0: i32) -> (i32, i32) {
    %c0_i32 = arith.constant 0 : i32
    %c0_i32_0 = arith.constant 0 : i32
    return %arg0, %c0_i32 : i32, i32
  }
  func.func @transform_2(%arg0: i32) -> (i32, i32) {
    %c0_i32 = arith.constant 0 : i32
    %c0_i32_0 = arith.constant 0 : i32
    return %arg0, %c0_i32 : i32, i32
  }
  func.func @transform_3(%arg0: i32) -> (i32, i32) {
    %c0_i32 = arith.constant 0 : i32
    %c0_i32_0 = arith.constant 0 : i32
    %c0_i32_1 = arith.constant 0 : i32
    return %c0_i32, %c0_i32_0 : i32, i32
  }
}

</mosaic_0001>

<llo_original>
// kernel: tpu_custom_call.1
$region0: #{tpu_custom_call.1}
  #allocation0 [shape = 'u32[]', space=smem, size = 0x4, offset = 0x4, fixed_abs, tag = 'smem constant byte address 0x4 - core index']
  #allocation1 [shape = 'u32[72,128]{1,0:T(1,128)}', space=vmem, size = 0x9000, scoped, tag = 'internal scratch']
  %s0 = inlined_call_operand.hbm [shape: f32[20,32], index: 0, kind: input, shape index: {}]
  %s1 = inlined_call_operand.hbm [shape: f32[20,32], index: 1, kind: input, shape index: {}]
  %s2 = inlined_call_operand.vmem [shape: f32[1,24], index: 2, kind: input, shape index: {}]
  %s3 = inlined_call_operand.hbm [shape: f32[1,1], index: 3, kind: output, shape index: {}]
  %s4 = sld [smem:[#allocation0]]
  $region34: #{tpu_custom_call.1} parent=0
    _
  %s6 = ssub.s32 1, %s4
  %s7 = scalar_select 0, %s6, %s4
  $region1: #{tpu_custom_call.1} parent=0
    #allocation2 [shape = 'u8[12288]{0}', space=vmem, size = 0x3000, scoped, tag = 'input window, operand 0, single buffered']
    #allocation3 [shape = 's32[1]{0}', space=sflag, size = 0x4, scoped, tag = 'scoped memory for tpu_custom_call.1']
    #allocation4 [shape = 's32[1]{0}', space=sflag, size = 0x4, scoped, tag = 'scoped memory for tpu_custom_call.1']
    #allocation5 [shape = 'u8[12288]{0}', space=vmem, size = 0x3000, scoped, tag = 'input window, operand 1, single buffered']
    #allocation6 [shape = 's32[1]{0}', space=sflag, size = 0x4, scoped, tag = 'scoped memory for tpu_custom_call.1']
    #allocation7 [shape = 'u8[512]{0}', space=vmem, size = 0x400, scoped, tag = 'output window, operand 0, single buffered']
    %8 = vsyncpa [#allocation3], 0
    %9 = vsyncpa [#allocation6], 0
    %10 = vsyncpa [#allocation4], 0
    // Predicated region
    $region2: #{tpu_custom_call.1} parent=1 // pred_check
      _
    $region3: #{tpu_custom_call.1} parent=1 // pred_check_branch
      %12 = sbr.rel (0) target = $region5
    $region4: #{tpu_custom_call.1} parent=1 // pred_region
      %14 = vsyncadd [#allocation3], 0
      %s15 = sshll.u32 %s0, 4
      %s16 = int_to_ptr.hbm [resolvable:$true] %s15
      %s17 = sshll.u32 [#allocation2], 4
      %s18 = int_to_ptr.vmem [resolvable:$true] %s17
      %23 = dma.hbm_to_vmem [thread:$0]  %s16, 384, %s18, [#allocation3], 128, 128, 8
    $region5: #{tpu_custom_call.1} parent=1 // pred_fallthru
      _
    // Predicated region
    $region6: #{tpu_custom_call.1} parent=1 // pred_check
      _
    $region7: #{tpu_custom_call.1} parent=1 // pred_check_branch
      %25 = sbr.rel (0) target = $region9
    $region8: #{tpu_custom_call.1} parent=1 // pred_region
      %27 = vsyncadd [#allocation6], 0
      %s28 = sshll.u32 %s1, 4
      %s29 = int_to_ptr.hbm [resolvable:$true] %s28
      %s30 = sshll.u32 [#allocation5], 4
      %s31 = int_to_ptr.vmem [resolvable:$true] %s30
      %36 = dma.hbm_to_vmem [thread:$0]  %s29, 384, %s31, [#allocation6], 128, 128, 8
    $region9: #{tpu_custom_call.1} parent=1 // pred_fallthru
      _
    // Predicated region
    $region10: #{tpu_custom_call.1} parent=1 // pred_check
      _
    $region11: #{tpu_custom_call.1} parent=1 // pred_check_branch
      %38 = sbr.rel (0) target = $region13
    $region12: #{tpu_custom_call.1} parent=1 // pred_region
      _
    $region13: #{tpu_custom_call.1} parent=1 // pred_fallthru
      _
    // Predicated region
    $region14: #{tpu_custom_call.1} parent=1 // pred_check
      _
    $region15: #{tpu_custom_call.1} parent=1 // pred_check_branch
      %40 = sbr.rel (0) target = $region17
    $region16: #{tpu_custom_call.1} parent=1 // pred_region
      %42 = dma.done [#allocation3], 384
    $region17: #{tpu_custom_call.1} parent=1 // pred_fallthru
      _
    // Predicated region
    $region18: #{tpu_custom_call.1} parent=1 // pred_check
      _
    $region19: #{tpu_custom_call.1} parent=1 // pred_check_branch
      %44 = sbr.rel (0) target = $region21
    $region20: #{tpu_custom_call.1} parent=1 // pred_region
      %46 = dma.done [#allocation6], 384
    $region21: #{tpu_custom_call.1} parent=1 // pred_fallthru
      _
    %p47 = scmp.eq.s32.totalorder 0, 0
    // Predicated region
    $region22: #{tpu_custom_call.1} parent=1 // pred_check
      %p48 = pneg %p47
    $region23: #{tpu_custom_call.1} parent=1 // pred_check_branch
      %50 = sbr.rel (%p48) target = $region25
    $region24: #{tpu_custom_call.1} parent=1 // pred_region
      %vm51 = vcmask 0
      %52 = vst.msk [vmem:[#allocation7] sm:$0x1] %vm51, 0.0
    $region25: #{tpu_custom_call.1} parent=1 // pred_fallthru
      _
    %v53 = vld [vmem:[#allocation2] sm:$0xff]
    %v54 = vld [vmem:[#allocation2 + $0x8] sm:$0xff]
    %v55 = vld [vmem:[#allocation2 + $0x10] sm:$0xff]
    %v56 = vld [vmem:[#allocation5] sm:$0xff]
    %v57 = vld [vmem:[#allocation5 + $0x8] sm:$0xff]
    %v58 = vld [vmem:[#allocation5 + $0x10] sm:$0xff]
    %v59 = vld [vmem:[%s2] sm:$0x1]
    %v60 = vsub.f32 %v53, %v56
    %v61 = vsub.f32 %v54, %v57
    %v62 = vsub.f32 %v55, %v58
    %v63 = vadd.f32 %v60, 1e-06
    %v64 = vadd.f32 %v61, 1e-06
    %v65 = vadd.f32 %v62, 1e-06
    %v66 = vmul.f32 %v63, %v63
    %v67 = vmul.f32 %v64, %v64
    %v68 = vmul.f32 %v65, %v65
    %vm69 = vcmask 261120
    %v70 = vsel %vm69, %v66, 0.0
    %71 = vadd.xlane.f32.xlu0 %v70
    %v72 = vpop.xlane.xlu0 %71
    %v73 = vsel %vm69, %v67, 0.0
    %74 = vadd.xlane.f32.xlu0 %v73
    %v75 = vpop.xlane.xlu0 %74
    %v76 = vsel %vm69, %v68, 0.0
    %77 = vadd.xlane.f32.xlu0 %v76
    %v78 = vpop.xlane.xlu0 %77
    %v79 = vrsqrt.pop %v72
    %v80 = vmul.f32 %v79, %v72
    %v81 = vmul.f32 %v80, %v79
    %v82 = vmul.f32 0.5, %v81
    %v83 = vsub.f32 1.5, %v82
    %v84 = vmul.f32 %v79, %v83
    %v85 = vmul.f32 %v72, %v84
    %vm86 = vcmp.eq.f32.partialorder %v72, inf
    %v87 = vsel %vm86, %v72, %v85
    %vm88 = vcmp.eq.f32.partialorder %v72, 0.0
    %v89 = vand.u32 %v72, 2147483648
    %v90 = vsel %vm88, %v89, %v87
    %v91 = vrsqrt.pop %v75
    %v92 = vmul.f32 %v91, %v75
    %v93 = vmul.f32 %v92, %v91
    %v94 = vmul.f32 0.5, %v93
    %v95 = vsub.f32 1.5, %v94
    %v96 = vmul.f32 %v91, %v95
    %v97 = vmul.f32 %v75, %v96
    %vm98 = vcmp.eq.f32.partialorder %v75, inf
    %v99 = vsel %vm98, %v75, %v97
    %vm100 = vcmp.eq.f32.partialorder %v75, 0.0
    %v101 = vand.u32 %v75, 2147483648
    %v102 = vsel %vm100, %v101, %v99
    %v103 = vrsqrt.pop %v78
    %v104 = vmul.f32 %v103, %v78
    %v105 = vmul.f32 %v104, %v103
    %v106 = vmul.f32 0.5, %v105
    %v107 = vsub.f32 1.5, %v106
    %v108 = vmul.f32 %v103, %v107
    %v109 = vmul.f32 %v78, %v108
    %vm110 = vcmp.eq.f32.partialorder %v78, inf
    %v111 = vsel %vm110, %v78, %v109
    %vm112 = vcmp.eq.f32.partialorder %v78, 0.0
    %v113 = vand.u32 %v78, 2147483648
    %v114 = vsel %vm112, %v113, %v111
    %v115 = vsub.f32 1.0, %v90
    %v116 = vsub.f32 1.0, %v102
    %v117 = vsub.f32 1.0, %v114
    %v118 = vmax.f32 %v115, 0.0
    %v119 = vmax.f32 %v116, 0.0
    %v120 = vmax.f32 %v117, 0.0
    %v121 = vmul.f32 %v118, %v118
    %v122 = vmul.f32 %v119, %v119
    %v123 = vmul.f32 %v120, %v120
    %s124 = smul.u32 0, 24
    %v125 = vlaneseq
    %v126 = vshrl.u32 %v125, 7
    %v127 = vadd.s32 %v126, 8
    %v128 = vadd.s32 %v126, 16
    %v129 = vstv %s124
    %v130 = vadd.s32 %v129, %v126
    %v131 = vadd.s32 %v129, %v127
    %v132 = vadd.s32 %v129, %v128
    %vm133 = vcmp.lt.s32.totalorder %v130, 20
    %vm134 = vcmp.lt.s32.totalorder %v131, 20
    %vm135 = vcmp.lt.s32.totalorder %v132, 20
    %v136 = vsel %vm133, %v72, 0.0
    %v137 = vsel %vm134, %v75, 0.0
    %v138 = vsel %vm135, %v78, 0.0
    %v139 = vsel %vm133, %v121, 0.0
    %v140 = vsel %vm134, %v122, 0.0
    %v141 = vsel %vm135, %v123, 0.0
    %v142 = vsub.f32 1.0, %v59
    %vm143 = vcmask 195584
    %v145 = vsel %vm143, %v142, 0
    %147 = vmatpush.msra.mxu0 0.0
    %148 = vmatpush.msra.mxu0 0.0
    %149 = vmatpush.msra.mxu0 0.0
    %150 = vmatpush.msra.mxu0 0.0
    %151 = vmatpush.msra.mxu0 0.0
    %152 = vmatpush.msra.mxu0 0.0
    %153 = vmatpush.msra.mxu0 0.0
    %154 = vmatpush.msra.mxu0 0.0
    %155 = vmatpush.msra.mxu0 0.0
    %156 = vmatpush.msra.mxu0 0.0
    %157 = vmatpush.msra.mxu0 0.0
    %158 = vmatpush.msra.mxu0 0.0
    %159 = vmatpush.msra.mxu0 0.0
    %160 = vmatpush.msra.mxu0 %v141
    %161 = vmatpush.msra.mxu0 %v140
    %162 = vmatpush.msra.mxu0 %v139
    %163 = vmatmul.f32.gmra.mxu0 %v145
    %v164 = vpop.f32.mrf.mxu0
    %v165 = vadd.f32 0.0, %v164
    %166 = vdwg.mxu0
    %v167 = vld [vmem:[#allocation7] sm:$0x1]
    %v169 = vsel %vm143, %v59, 0
    %171 = vmatpush.msra.mxu0 0.0
    %172 = vmatpush.msra.mxu0 0.0
    %173 = vmatpush.msra.mxu0 0.0
    %174 = vmatpush.msra.mxu0 0.0
    %175 = vmatpush.msra.mxu0 0.0
    %176 = vmatpush.msra.mxu0 0.0
    %177 = vmatpush.msra.mxu0 0.0
    %178 = vmatpush.msra.mxu0 0.0
    %179 = vmatpush.msra.mxu0 0.0
    %180 = vmatpush.msra.mxu0 0.0
    %181 = vmatpush.msra.mxu0 0.0
    %182 = vmatpush.msra.mxu0 0.0
    %183 = vmatpush.msra.mxu0 0.0
    %184 = vmatpush.msra.mxu0 %v138
    %185 = vmatpush.msra.mxu0 %v137
    %186 = vmatpush.msra.mxu0 %v136
    %187 = vmatmul.f32.gmra.mxu0 %v169
    %v188 = vpop.f32.mrf.mxu0
    %v189 = vadd.f32 %v165, %v188
    %190 = vdwg.mxu0
    %v191 = vadd.f32 %v167, %v189
    %vm192 = vcmask 0
    %193 = vst.msk [vmem:[#allocation7] sm:$0x1] %vm192, %v191
    // Predicated region
    $region26: #{tpu_custom_call.1} parent=1 // pred_check
      _
    $region27: #{tpu_custom_call.1} parent=1 // pred_check_branch
      %195 = sbr.rel (0) target = $region29
    $region28: #{tpu_custom_call.1} parent=1 // pred_region
      %197 = vsyncadd [#allocation4], 0
      %s199 = sshll.u32 [#allocation7], 4
      %s200 = int_to_ptr.vmem [resolvable:$true] %s199
      %s201 = sshll.u32 %s3, 4
      %s202 = int_to_ptr.hbm [resolvable:$true] %s201
      %204 = dma.vmem_to_hbm [thread:$0]  %s200, 16, %s202, [#allocation4]
    $region29: #{tpu_custom_call.1} parent=1 // pred_fallthru
      _
    // Predicated region
    $region30: #{tpu_custom_call.1} parent=1 // pred_check
      _
    $region31: #{tpu_custom_call.1} parent=1 // pred_check_branch
      %206 = sbr.rel (0) target = $region33
    $region32: #{tpu_custom_call.1} parent=1 // pred_region
      %208 = dma.done [#allocation4], 16
    $region33: #{tpu_custom_call.1} parent=1 // pred_fallthru
      _
    %209 = vsyncpa [#allocation3], 1
    %210 = vsyncpa [#allocation6], 1
    %211 = vsyncpa [#allocation4], 1

</llo_original>
